<compile_context>
chip_gen: v7x
topology: tpu7x:2x2x1
jax: 0.10.0
libtpu: 0.0.40
codegen_flags: <defaults>
</compile_context>

<pallas_src>
import functools
import math

import jax
import jax.numpy as jnp
from jax.experimental import pallas as pl
from jax.experimental.pallas import tpu as pltpu


_SQRT_2_OVER_PI = math.sqrt(2.0 / math.pi)


def _gelu_new(x):
    # ACT2FN["gelu_new"]: tanh approximation of GELU
    return 0.5 * x * (1.0 + jnp.tanh(_SQRT_2_OVER_PI * (x + 0.044715 * (x * x * x))))


def _relu(x):
    return jnp.maximum(x, 0.0)


def _gelu_exact(x):
    return jax.nn.gelu(x, approximate=False)


_ACT_FNS = {"gelu_new": _gelu_new, "relu": _relu, "gelu": _gelu_exact}


def _rms_norm(h, lnw, eps):
    # UMT5LayerNorm: variance in fp32, no mean subtraction, scale by weight.
    hf = h.astype(jnp.float32)
    var = jnp.mean(hf * hf, axis=-1, keepdims=True)
    normed = hf * jax.lax.rsqrt(var + eps)
    return (lnw.astype(jnp.float32) * normed).astype(h.dtype)


# ------------------------------- kernels -------------------------------


def _ff_gated_kernel(h_ref, lnw_ref, wi_ref, wo_ref, out_ref, normed_ref, acc_ref,
                     *, eps, act, tf):
    f = pl.program_id(1)

    @pl.when(f == 0)
    def _init():
        # RMS-norm computed once per row tile, kept resident for all F steps.
        normed_ref[...] = _rms_norm(h_ref[...], lnw_ref[...], eps).astype(normed_ref.dtype)
        acc_ref[...] = jnp.zeros_like(acc_ref)

    normed = normed_ref[...]                                               # (tm, D)
    # wi_ref holds [wi_0 block f | wi_1 block f] -> single MXU pass, fp32 accumulate.
    gl = jnp.dot(normed, wi_ref[...], preferred_element_type=jnp.float32)  # (tm, 2*tf)
    g, lin = gl[:, :tf], gl[:, tf:]                                        # lane-aligned split
    inter = (_ACT_FNS[act](g) * lin).astype(wo_ref.dtype)                  # cast to wo dtype (torch)
    acc_ref[...] += jnp.dot(inter, wo_ref[...], preferred_element_type=jnp.float32)

    @pl.when(f == pl.num_programs(1) - 1)
    def _finalize():
        out_ref[...] = (h_ref[...].astype(jnp.float32) + acc_ref[...]).astype(out_ref.dtype)


def _ff_plain_kernel(h_ref, lnw_ref, wi_ref, wo_ref, out_ref, normed_ref, acc_ref,
                     *, eps, act):
    f = pl.program_id(1)

    @pl.when(f == 0)
    def _init():
        normed_ref[...] = _rms_norm(h_ref[...], lnw_ref[...], eps).astype(normed_ref.dtype)
        acc_ref[...] = jnp.zeros_like(acc_ref)

    x = jnp.dot(normed_ref[...], wi_ref[...], preferred_element_type=jnp.float32)  # (tm, tf)
    inter = _ACT_FNS[act](x).astype(wo_ref.dtype)
    acc_ref[...] += jnp.dot(inter, wo_ref[...], preferred_element_type=jnp.float32)

    @pl.when(f == pl.num_programs(1) - 1)
    def _finalize():
        out_ref[...] = (h_ref[...].astype(jnp.float32) + acc_ref[...]).astype(out_ref.dtype)


# ------------------------------ tiling utils ------------------------------


def _choose_f_tile(F):
    for tf in (512, 256, 128):
        if F % tf == 0:
            return tf
    return F  # small / irregular d_ff: single F step (block == full extent, allowed)


def _choose_row_tile(n_rows):
    if n_rows >= 512:
        return 512
    # round up to a multiple of 16 sublanes (packs bf16 cleanly, >= 8 for fp32)
    return max(16, -(-n_rows // 16) * 16)


def _vmem_limit_bytes():
    try:
        cap = getattr(pltpu.get_tpu_info(), "vmem_capacity_bytes", None)
    except Exception:
        cap = None
    if not cap:
        cap = 64 * 1024 * 1024  # conservative (v7x per-TC)
    return max(32 * 1024 * 1024, cap - 12 * 1024 * 1024)


# ------------------------------ parameter prep ------------------------------


def prepare_umt5_ff_params(ln_weight, wo, wi_0=None, wi_1=None, wi=None, *,
                           is_gated_act=True, block_f=None, mxu_dtype=None):
    """One-time weight preparation (transpose / per-block interleave / optional bf16 cast).

    Call at parameter-load time, NOT per forward call — this is an HBM-level copy of
    ~3*D*F elements.  Weights are expected in PyTorch nn.Linear (out_features, in_features)
    layout.
    """
    wo = jnp.asarray(wo)
    D = wo.shape[0]
    if is_gated_act:
        assert wi_0 is not None and wi_1 is not None
        wi_0, wi_1 = jnp.asarray(wi_0), jnp.asarray(wi_1)
        F = wi_0.shape[0]
    else:
        assert wi is not None
        wi = jnp.asarray(wi)
        F = wi.shape[0]

    tf = block_f or _choose_f_tile(F)
    assert F % tf == 0, "block_f must divide d_ff"
    wdt = mxu_dtype or wo.dtype

    wo_t = wo.T.astype(wdt)                                               # (F, D)
    if is_gated_act:
        nf = F // tf
        # Interleave per tf-block: columns [2*f*tf : 2*f*tf+tf) = wi_0 block f,
        #                          columns [2*f*tf+tf : 2*(f+1)*tf) = wi_1 block f.
        w_in = jnp.concatenate(
            [wi_0.T.reshape(D, nf, tf), wi_1.T.reshape(D, nf, tf)], axis=-1
        ).reshape(D, 2 * F).astype(wdt)                                   # (D, 2F)
    else:
        w_in = wi.T.astype(wdt)                                           # (D, F)

    return dict(is_gated_act=is_gated_act, D=D, F=F, tf=tf,
                lnw=jnp.asarray(ln_weight).reshape(1, D),
                w_in=w_in, wo_t=wo_t, mxu_dtype=mxu_dtype)


# ------------------------------ forward wrapper ------------------------------


def umt5_layer_ff(hidden_states, params, *, act="gelu_new", eps=1e-6, block_rows=None):
    """UMT5LayerFF forward (dropout = identity).  `params` from prepare_umt5_ff_params."""
    B, S, D = hidden_states.shape
    assert D == params["D"]
    F, tf = params["F"], params["tf"]
    gated = params["is_gated_act"]

    BS = B * S
    tm = block_rows or _choose_row_tile(BS)
    n_row_tiles = -(-BS // tm)
    rows = n_row_tiles * tm
    n_f = F // tf

    h2d = hidden_states.reshape(BS, D)
    if rows != BS:
        h2d = jnp.pad(h2d, ((0, rows - BS), (0, 0)))   # zero rows are harmless (RMS of 0 -> 0)

    comp_dtype = params["mxu_dtype"] or hidden_states.dtype

    row_spec = pl.BlockSpec((tm, D), lambda i, f: (i, 0))
    lnw_spec = pl.BlockSpec((1, D), lambda i, f: (0, 0))
    wo_spec = pl.BlockSpec((tf, D), lambda i, f: (f, 0))
    if gated:
        wi_spec = pl.BlockSpec((D, 2 * tf), lambda i, f: (0, f))
        kernel = functools.partial(_ff_gated_kernel, eps=eps, act=act, tf=tf)
    else:
        wi_spec = pl.BlockSpec((D, tf), lambda i, f: (0, f))
        kernel = functools.partial(_ff_plain_kernel, eps=eps, act=act)

    n_mm = 3 if gated else 2
    h_bytes = int(h2d.size) * h2d.dtype.itemsize
    w_bytes = (int(params["w_in"].size) * params["w_in"].dtype.itemsize
               + int(params["wo_t"].size) * params["wo_t"].dtype.itemsize)
    cost = pl.CostEstimate(
        flops=2 * rows * D * F * n_mm + 4 * rows * D,
        transcendentals=rows * F if act in ("gelu_new", "gelu") else 0,
        bytes_accessed=2 * h_bytes + n_row_tiles * w_bytes
                       + int(params["lnw"].size) * params["lnw"].dtype.itemsize,
    )

    out = pl.pallas_call(
        kernel,
        out_shape=jax.ShapeDtypeStruct((rows, D), hidden_states.dtype),
        grid_spec=pltpu.PrefetchScalarGridSpec(
            num_scalar_prefetch=0,
            grid=(n_row_tiles, n_f),                     # F last: reduction axis
            in_specs=[row_spec, lnw_spec, wi_spec, wo_spec],
            out_specs=row_spec,
            scratch_shapes=[pltpu.VMEM((tm, D), comp_dtype),     # normed, computed once per row tile
                            pltpu.VMEM((tm, D), jnp.float32)],   # fp32 accumulator
        ),
        compiler_params=pltpu.CompilerParams(
            dimension_semantics=("parallel", "arbitrary"),
            vmem_limit_bytes=_vmem_limit_bytes(),
        ),
        cost_estimate=cost,
    )(h2d, params["lnw"], params["w_in"], params["wo_t"])

    return out[:BS].reshape(B, S, D)


# ------------------------- pure-JAX references -------------------------


def _reference_rms_norm(hidden, ln_w, eps):
    hf = hidden.astype(jnp.float32)
    var = jnp.mean(hf * hf, axis=-1, keepdims=True)
    return (ln_w * (hf * jax.lax.rsqrt(var + eps))).astype(hidden.dtype)


def _reference_ff_gated(hidden, ln_w, wi_0, wi_1, wo, *, eps=1e-6, act="gelu_new"):
    normed = _reference_rms_norm(hidden, ln_w, eps)
    g = _ACT_FNS[act](normed @ wi_0.T)
    lin = normed @ wi_1.T
    return hidden + (g * lin) @ wo.T


def _reference_ff_plain(hidden, ln_w, wi, wo, *, eps=1e-6, act="relu"):
    normed = _reference_rms_norm(hidden, ln_w, eps)
    return hidden + _ACT_FNS[act](normed @ wi.T) @ wo.T


if __name__ == "__main__":
    key = jax.random.PRNGKey(0)

    # --- test 1: gated, small shapes (UMT5 default: is_gated_act=True, gelu_new) ---
    B, S, d_model, d_ff = 2, 8, 32, 64
    k0, k1, k2, k3, k4, k5 = jax.random.split(key, 6)
    hidden = jax.random.normal(k0, (B, S, d_model), dtype=jnp.float32)
    ln_w = 1.0 + 0.1 * jax.random.normal(k1, (d_model,), dtype=jnp.float32)
    # PyTorch nn.Linear layout: (out_features, in_features)
    wi_0 = 0.05 * jax.random.normal(k2, (d_ff, d_model), dtype=jnp.float32)
    wi_1 = 0.05 * jax.random.normal(k3, (d_ff, d_model), dtype=jnp.float32)
    wo = 0.05 * jax.random.normal(k4, (d_model, d_ff), dtype=jnp.float32)
    wi = 0.05 * jax.random.normal(k5, (d_ff, d_model), dtype=jnp.float32)

    params_g = prepare_umt5_ff_params(ln_w, wo, wi_0=wi_0, wi_1=wi_1, is_gated_act=True)
    out_g = umt5_layer_ff(hidden, params_g, act="gelu_new")
    jax.block_until_ready(out_g)
    ref_g = _reference_ff_gated(hidden, ln_w, wi_0, wi_1, wo)
    assert jnp.allclose(out_g, ref_g, atol=1e-4, rtol=1e-4)

    # --- test 2: non-gated (UMT5DenseActDense with ReLU) ---
    params_p = prepare_umt5_ff_params(ln_w, wo, wi=wi, is_gated_act=False)
    out_p = umt5_layer_ff(hidden, params_p, act="relu")
    jax.block_until_ready(out_p)
    ref_p = _reference_ff_plain(hidden, ln_w, wi, wo, act="relu")
    assert jnp.allclose(out_p, ref_p, atol=1e-4, rtol=1e-4)

    # --- test 3: multi F-step accumulation + row padding (BS=26 -> padded, F=256 -> 2 f-steps) ---
    B2, S2, D2, F2 = 2, 13, 128, 256
    j0, j1, j2, j3, j4 = jax.random.split(jax.random.PRNGKey(1), 5)
    hidden2 = jax.random.normal(j0, (B2, S2, D2), dtype=jnp.float32)
    ln_w2 = 1.0 + 0.1 * jax.random.normal(j1, (D2,), dtype=jnp.float32)
    wi_0b = 0.05 * jax.random.normal(j2, (F2, D2), dtype=jnp.float32)
    wi_1b = 0.05 * jax.random.normal(j3, (F2, D2), dtype=jnp.float32)
    wob = 0.05 * jax.random.normal(j4, (D2, F2), dtype=jnp.float32)

    params2 = prepare_umt5_ff_params(ln_w2, wob, wi_0=wi_0b, wi_1=wi_1b, is_gated_act=True)
    out2 = umt5_layer_ff(hidden2, params2, act="gelu_new")
    jax.block_until_ready(out2)
    ref2 = _reference_ff_gated(hidden2, ln_w2, wi_0b, wi_1b, wob)
    assert jnp.allclose(out2, ref2, atol=1e-4, rtol=1e-4)

    # --- test 4: bf16 MXU operands with fp32 accumulation (flagged small deviation vs fp32 ref) ---
    params2_bf16 = prepare_umt5_ff_params(ln_w2, wob, wi_0=wi_0b, wi_1=wi_1b,
                                          is_gated_act=True, mxu_dtype=jnp.bfloat16)
    out2_bf16 = umt5_layer_ff(hidden2, params2_bf16, act="gelu_new")
    jax.block_until_ready(out2_bf16)
    assert jnp.allclose(out2_bf16, ref2, atol=5e-2, rtol=5e-2)

    print("KERNEL_OK")
</pallas_src>

<mosaic_0001>
module attributes {stable_mosaic.version = 11 : i64} {
  func.func @_ff_gated_kernel(%arg0: i32, %arg1: i32, %arg2: memref<16x32xf32, #tpu.memory_space<vmem>>, %arg3: memref<1x32xf32, #tpu.memory_space<vmem>>, %arg4: memref<32x128xf32, #tpu.memory_space<vmem>>, %arg5: memref<64x32xf32, #tpu.memory_space<vmem>>, %arg6: memref<16x32xf32, #tpu.memory_space<vmem>>, %arg7: memref<16x32xf32, #tpu.memory_space<vmem>>, %arg8: memref<16x32xf32, #tpu.memory_space<vmem>>) attributes {dimension_semantics = [#tpu.dimension_semantics<parallel>, #tpu.dimension_semantics<arbitrary>], iteration_bounds = array<i64: 1, 1>, scalar_prefetch = 0 : i64, scratch_operands = 2 : i64, tpu.core_type = #tpu.core_type<tc>, window_params = [{transform_indices = @transform_0, window_bounds = array<i64: 16, 32>}, {pipeline_mode = #tpu.pipeline_mode<synchronous>, transform_indices = @transform_1, window_bounds = array<i64: 1, 32>}, {transform_indices = @transform_2, window_bounds = array<i64: 32, 128>}, {transform_indices = @transform_3, window_bounds = array<i64: 64, 32>}, {transform_indices = @transform_4, window_bounds = array<i64: 16, 32>}]} {
    %c0_i32 = arith.constant 0 : i32
    %0 = arith.cmpi eq, %arg1, %c0_i32 : i32
    %1 = arith.extui %0 : i1 to i32
    %c0_i32_0 = arith.constant 0 : i32
    %2 = arith.cmpi ne, %1, %c0_i32_0 : i32
    scf.if %2 {
      %c0_17 = arith.constant 0 : index
      %c0_18 = arith.constant 0 : index
      %30 = vector.load %arg2[%c0_17, %c0_18] : memref<16x32xf32, #tpu.memory_space<vmem>>, vector<16x32xf32>
      %c0_19 = arith.constant 0 : index
      %c0_20 = arith.constant 0 : index
      %31 = vector.load %arg3[%c0_19, %c0_20] : memref<1x32xf32, #tpu.memory_space<vmem>>, vector<1x32xf32>
      %32 = arith.mulf %30, %30 : vector<16x32xf32>
      %cst_21 = arith.constant dense<0.000000e+00> : vector<16xf32>
      %33 = vector.multi_reduction <add>, %32, %cst_21 [1] : vector<16x32xf32> to vector<16xf32>
      %34 = vector.shape_cast %33 : vector<16xf32> to vector<16x1xf32>
      %cst_22 = arith.constant 3.200000e+01 : f32
      %35 = vector.broadcast %cst_22 : f32 to vector<16x1xf32>
      %36 = arith.divf %34, %35 : vector<16x1xf32>
      %cst_23 = arith.constant 9.99999997E-7 : f32
      %37 = vector.broadcast %cst_23 : f32 to vector<16x1xf32>
      %38 = arith.addf %36, %37 : vector<16x1xf32>
      %39 = math.rsqrt %38 : vector<16x1xf32>
      %40 = vector.broadcast %39 : vector<16x1xf32> to vector<16x32xf32>
      %41 = arith.mulf %30, %40 : vector<16x32xf32>
      %42 = vector.broadcast %31 : vector<1x32xf32> to vector<16x32xf32>
      %43 = arith.mulf %42, %41 : vector<16x32xf32>
      %c0_24 = arith.constant 0 : index
      %c0_25 = arith.constant 0 : index
      %44 = vector.load %arg7[%c0_24, %c0_25] : memref<16x32xf32, #tpu.memory_space<vmem>>, vector<16x32xf32>
      tpu.vector_store %arg7[%c0_24, %c0_25], %43 {strides = array<i32>} : memref<16x32xf32, #tpu.memory_space<vmem>>, vector<16x32xf32>,
      %cst_26 = arith.constant 0.000000e+00 : f32
      %45 = vector.broadcast %cst_26 : f32 to vector<16x32xf32>
      %c0_27 = arith.constant 0 : index
      %c0_28 = arith.constant 0 : index
      %46 = vector.load %arg8[%c0_27, %c0_28] : memref<16x32xf32, #tpu.memory_space<vmem>>, vector<16x32xf32>
      tpu.vector_store %arg8[%c0_27, %c0_28], %45 {strides = array<i32>} : memref<16x32xf32, #tpu.memory_space<vmem>>, vector<16x32xf32>,
    } else {
    }
    %c0 = arith.constant 0 : index
    %c0_1 = arith.constant 0 : index
    %3 = vector.load %arg7[%c0, %c0_1] : memref<16x32xf32, #tpu.memory_space<vmem>>, vector<16x32xf32>
    %c0_2 = arith.constant 0 : index
    %c0_3 = arith.constant 0 : index
    %4 = vector.load %arg4[%c0_2, %c0_3] : memref<32x128xf32, #tpu.memory_space<vmem>>, vector<32x128xf32>
    %cst = arith.constant dense<0.000000e+00> : vector<16x128xf32>
    %5 = tpu.matmul %3, %4, %cst {dimension_numbers = #tpu.dot_dimension_numbers<[1], [0], [0], [1], [0, 0, 1, 1], [], []>} : vector<16x32xf32>, vector<32x128xf32>, vector<16x128xf32> -> vector<16x128xf32>
    %6 = vector.extract_strided_slice %5 {offsets = [0, 0], sizes = [16, 64], strides = [1, 1]} : vector<16x128xf32> to vector<16x64xf32>
    %7 = vector.extract_strided_slice %5 {offsets = [0, 64], sizes = [16, 64], strides = [1, 1]} : vector<16x128xf32> to vector<16x64xf32>
    %cst_4 = arith.constant 5.000000e-01 : f32
    %8 = vector.broadcast %cst_4 : f32 to vector<16x64xf32>
    %9 = arith.mulf %8, %6 : vector<16x64xf32>
    %10 = arith.mulf %6, %6 : vector<16x64xf32>
    %11 = arith.mulf %10, %6 : vector<16x64xf32>
    %cst_5 = arith.constant 4.471500e-02 : f32
    %12 = vector.broadcast %cst_5 : f32 to vector<16x64xf32>
    %13 = arith.mulf %12, %11 : vector<16x64xf32>
    %14 = arith.addf %6, %13 : vector<16x64xf32>
    %cst_6 = arith.constant 0.797884583 : f32
    %15 = vector.broadcast %cst_6 : f32 to vector<16x64xf32>
    %16 = arith.mulf %15, %14 : vector<16x64xf32>
    %17 = math.tanh %16 : vector<16x64xf32>
    %cst_7 = arith.constant 1.000000e+00 : f32
    %18 = vector.broadcast %cst_7 : f32 to vector<16x64xf32>
    %19 = arith.addf %18, %17 : vector<16x64xf32>
    %20 = arith.mulf %9, %19 : vector<16x64xf32>
    %21 = arith.mulf %20, %7 : vector<16x64xf32>
    %c0_8 = arith.constant 0 : index
    %c0_9 = arith.constant 0 : index
    %22 = vector.load %arg8[%c0_8, %c0_9] : memref<16x32xf32, #tpu.memory_space<vmem>>, vector<16x32xf32>
    %c0_10 = arith.constant 0 : index
    %c0_11 = arith.constant 0 : index
    %23 = vector.load %arg5[%c0_10, %c0_11] : memref<64x32xf32, #tpu.memory_space<vmem>>, vector<64x32xf32>
    %cst_12 = arith.constant dense<0.000000e+00> : vector<16x32xf32>
    %24 = tpu.matmul %21, %23, %cst_12 {dimension_numbers = #tpu.dot_dimension_numbers<[1], [0], [0], [1], [0, 0, 1, 1], [], []>} : vector<16x64xf32>, vector<64x32xf32>, vector<16x32xf32> -> vector<16x32xf32>
    %25 = arith.addf %22, %24 : vector<16x32xf32>
    %c0_13 = arith.constant 0 : index
    %c0_14 = arith.constant 0 : index
    %26 = vector.load %arg8[%c0_13, %c0_14] : memref<16x32xf32, #tpu.memory_space<vmem>>, vector<16x32xf32>
    tpu.vector_store %arg8[%c0_13, %c0_14], %25 {strides = array<i32>} : memref<16x32xf32, #tpu.memory_space<vmem>>, vector<16x32xf32>,
    %c0_i32_15 = arith.constant 0 : i32
    %27 = arith.cmpi eq, %arg1, %c0_i32_15 : i32
    %28 = arith.extui %27 : i1 to i32
    %c0_i32_16 = arith.constant 0 : i32
    %29 = arith.cmpi ne, %28, %c0_i32_16 : i32
    scf.if %29 {
      %c0_17 = arith.constant 0 : index
      %c0_18 = arith.constant 0 : index
      %30 = vector.load %arg2[%c0_17, %c0_18] : memref<16x32xf32, #tpu.memory_space<vmem>>, vector<16x32xf32>
      %c0_19 = arith.constant 0 : index
      %c0_20 = arith.constant 0 : index
      %31 = vector.load %arg8[%c0_19, %c0_20] : memref<16x32xf32, #tpu.memory_space<vmem>>, vector<16x32xf32>
      %32 = arith.addf %30, %31 : vector<16x32xf32>
      %c0_21 = arith.constant 0 : index
      %c0_22 = arith.constant 0 : index
      %33 = vector.load %arg6[%c0_21, %c0_22] : memref<16x32xf32, #tpu.memory_space<vmem>>, vector<16x32xf32>
      tpu.vector_store %arg6[%c0_21, %c0_22], %32 {strides = array<i32>} : memref<16x32xf32, #tpu.memory_space<vmem>>, vector<16x32xf32>,
    } else {
    }
    return
  }
  func.func @transform_0(%arg0: i32, %arg1: i32) -> (i32, i32) {
    %c0_i32 = arith.constant 0 : i32
    %c0_i32_0 = arith.constant 0 : i32
    return %arg0, %c0_i32 : i32, i32
  }
  func.func @transform_1(%arg0: i32, %arg1: i32) -> (i32, i32) {
    %c0_i32 = arith.constant 0 : i32
    %c0_i32_0 = arith.constant 0 : i32
    %c0_i32_1 = arith.constant 0 : i32
    return %c0_i32, %c0_i32_0 : i32, i32
  }
  func.func @transform_2(%arg0: i32, %arg1: i32) -> (i32, i32) {
    %c0_i32 = arith.constant 0 : i32
    %c0_i32_0 = arith.constant 0 : i32
    return %c0_i32, %arg1 : i32, i32
  }
  func.func @transform_3(%arg0: i32, %arg1: i32) -> (i32, i32) {
    %c0_i32 = arith.constant 0 : i32
    %c0_i32_0 = arith.constant 0 : i32
    return %arg1, %c0_i32 : i32, i32
  }
  func.func @transform_4(%arg0: i32, %arg1: i32) -> (i32, i32) {
    %c0_i32 = arith.constant 0 : i32
    %c0_i32_0 = arith.constant 0 : i32
    return %arg0, %c0_i32 : i32, i32
  }
}

</mosaic_0001>

<llo_original>
// kernel: tpu_custom_call.1
$region0: #{tpu_custom_call.1}
  #allocation0 [shape = 'u32[]', space=smem, size = 0x4, offset = 0x4, fixed_abs, tag = 'smem constant byte address 0x4 - core index']
  #allocation1 [shape = 'u32[144,128]{1,0:T(1,128)}', space=vmem, size = 0x12000, scoped, tag = 'internal scratch']
  #allocation2 [shape = 'f32[16,32]{1,0:T(8,128)}', space=vmem, size = 0x2000, scoped, tag = 'scratch operand']
  #allocation3 [shape = 'f32[16,32]{1,0:T(8,128)}', space=vmem, size = 0x2000, scoped, tag = 'scratch operand']
  %s0 = inlined_call_operand.vmem [shape: f32[16,32], index: 0, kind: input, shape index: {}]
  %s1 = inlined_call_operand.vmem [shape: f32[1,32], index: 1, kind: input, shape index: {}]
  %s2 = inlined_call_operand.vmem [shape: f32[32,128], index: 2, kind: input, shape index: {}]
  %s3 = inlined_call_operand.vmem [shape: f32[64,32], index: 3, kind: input, shape index: {}]
  %s4 = inlined_call_operand.hbm [shape: f32[16,32], index: 4, kind: output, shape index: {}]
  %s5 = sld [smem:[#allocation0]]
  $region34: #{tpu_custom_call.1} parent=0
    _
  %s7 = ssub.s32 1, %s5
  %s8 = scalar_select 0, %s7, %s5
  $region1: #{tpu_custom_call.1} parent=0
    #allocation4 [shape = 'u8[8192]{0}', space=vmem, size = 0x2000, scoped, tag = 'output window, operand 0, single buffered']
    #allocation5 [shape = 's32[1]{0}', space=sflag, size = 0x4, scoped, tag = 'scoped memory for tpu_custom_call.1']
    %9 = vsyncpa [#allocation5], 0
    // Predicated region
    $region2: #{tpu_custom_call.1} parent=1 // pred_check
      _
    $region3: #{tpu_custom_call.1} parent=1 // pred_check_branch
      %11 = sbr.rel (0) target = $region5
    $region4: #{tpu_custom_call.1} parent=1 // pred_region
      _
    $region5: #{tpu_custom_call.1} parent=1 // pred_fallthru
      _
    // Predicated region
    $region6: #{tpu_custom_call.1} parent=1 // pred_check
      _
    $region7: #{tpu_custom_call.1} parent=1 // pred_check_branch
      %13 = sbr.rel (0) target = $region9
    $region8: #{tpu_custom_call.1} parent=1 // pred_region
      _
    $region9: #{tpu_custom_call.1} parent=1 // pred_fallthru
      _
    // Predicated region
    $region10: #{tpu_custom_call.1} parent=1 // pred_check
      _
    $region11: #{tpu_custom_call.1} parent=1 // pred_check_branch
      %15 = sbr.rel (0) target = $region13
    $region12: #{tpu_custom_call.1} parent=1 // pred_region
      _
    $region13: #{tpu_custom_call.1} parent=1 // pred_fallthru
      _
    // Predicated region
    $region14: #{tpu_custom_call.1} parent=1 // pred_check
      _
    $region15: #{tpu_custom_call.1} parent=1 // pred_check_branch
      %17 = sbr.rel (0) target = $region17
    $region16: #{tpu_custom_call.1} parent=1 // pred_region
      _
    $region17: #{tpu_custom_call.1} parent=1 // pred_fallthru
      _
    %p18 = scmp.eq.s32.totalorder 0, 0
    // Predicated region
    $region18: #{tpu_custom_call.1} parent=1 // pred_check
      %p19 = pneg %p18
    $region19: #{tpu_custom_call.1} parent=1 // pred_check_branch
      %21 = sbr.rel (%p19) target = $region21
    $region20: #{tpu_custom_call.1} parent=1 // pred_region
      %v22 = vld [vmem:[%s0] sm:$0xff]
      %v23 = vld [vmem:[%s0 + $0x8] sm:$0xff]
      %v24 = vld [vmem:[%s1] sm:$0x1]
      %v25 = vmul.f32 %v22, %v22
      %v26 = vmul.f32 %v23, %v23
      %vm27 = vcmask 261120
      %v28 = vsel %vm27, %v25, 0.0
      %29 = vadd.xlane.f32.xlu0 %v28
      %v30 = vpop.xlane.xlu0 %29
      %v31 = vsel %vm27, %v26, 0.0
      %32 = vadd.xlane.f32.xlu0 %v31
      %v33 = vpop.xlane.xlu0 %32
      %v34 = vrcp.pop 32.0
      %v35 = vmul.f32 %v30, %v34
      %v36 = vmul.f32 %v33, %v34
      %v37 = vadd.f32 %v35, 1e-06
      %v38 = vadd.f32 %v36, 1e-06
      %v39 = vrsqrt.pop %v37
      %v40 = vrsqrt.pop %v38
      %v41 = vmul.f32 %v22, %v39
      %v42 = vmul.f32 %v23, %v40
      %v44 = vlaneseq
      %v45 = vshrl.u32 %v44, 7
      %v46 = vsub.s32 0, %v45
      %v47 = vrot.slane %v24, %v46
      %v49 = vmul.f32 %v47, %v41
      %v50 = vmul.f32 %v47, %v42
      %51 = vst.msk [vmem:[#allocation2] sm:$0xff] %vm27, %v49
      %52 = vst.msk [vmem:[#allocation2 + $0x8] sm:$0xff] %vm27, %v50
      %53 = vst.msk [vmem:[#allocation3] sm:$0xff] %vm27, 0.0
      %54 = vst.msk [vmem:[#allocation3 + $0x8] sm:$0xff] %vm27, 0.0
    $region21: #{tpu_custom_call.1} parent=1 // pred_fallthru
      _
    %v55 = vld [vmem:[#allocation2] sm:$0xff]
    %v56 = vld [vmem:[#allocation2 + $0x8] sm:$0xff]
    %v57 = vld [vmem:[%s2] sm:$0xff]
    %v58 = vld [vmem:[%s2 + $0x8] sm:$0xff]
    %v59 = vld [vmem:[%s2 + $0x10] sm:$0xff]
    %v60 = vld [vmem:[%s2 + $0x18] sm:$0xff]
    %vm61 = vcmask 261120
    %v63 = vsel %vm61, %v55, 0
    %v66 = vsel %vm61, %v56, 0
    %68 = vmatprep.subr.mxu0 0.0
    %69 = vmatpush1.msra.mxu0 %v57
    %70 = vmatprep.subr.mxu0 0.0
    %71 = vmatpush1.msra.mxu0 %v58
    %72 = vmatprep.subr.mxu0 0.0
    %73 = vmatpush1.msra.mxu0 %v59
    %74 = vmatprep.subr.mxu0 0.0
    %75 = vmatpush1.msra.mxu0 %v60
    %76 = vmatprep.subr.mxu0 0.0
    %77 = vmatpush1.msra.mxu0 0.0
    %78 = vmatprep.subr.mxu0 0.0
    %79 = vmatpush1.msra.mxu0 0.0
    %80 = vmatprep.subr.mxu0 0.0
    %81 = vmatpush1.msra.mxu0 0.0
    %82 = vmatprep.subr.mxu0 0.0
    %83 = vmatpush1.msra.mxu0 0.0
    %84 = vmatprep.subr.mxu0 0.0
    %85 = vmatpush1.msra.mxu0 0.0
    %86 = vmatprep.subr.mxu0 0.0
    %87 = vmatpush1.msra.mxu0 0.0
    %88 = vmatprep.subr.mxu0 0.0
    %89 = vmatpush1.msra.mxu0 0.0
    %90 = vmatprep.subr.mxu0 0.0
    %91 = vmatpush1.msra.mxu0 0.0
    %92 = vmatprep.subr.mxu0 0.0
    %93 = vmatpush1.msra.mxu0 0.0
    %94 = vmatprep.subr.mxu0 0.0
    %95 = vmatpush1.msra.mxu0 0.0
    %96 = vmatprep.subr.mxu0 0.0
    %97 = vmatpush1.msra.mxu0 0.0
    %98 = vmatprep.subr.mxu0 0.0
    %99 = vmatpush1.msra.mxu0 0.0
    %100 = vmatprep.subr.mxu0 0.0
    %101 = vmatpush1.msra.mxu0 0.0
    %102 = vmatprep.subr.mxu0 0.0
    %103 = vmatpush1.msra.mxu0 0.0
    %104 = vmatprep.subr.mxu0 0.0
    %105 = vmatpush1.msra.mxu0 0.0
    %106 = vmatprep.subr.mxu0 0.0
    %107 = vmatpush1.msra.mxu0 0.0
    %108 = vmatprep.subr.mxu0 0.0
    %109 = vmatpush1.msra.mxu0 0.0
    %110 = vmatprep.subr.mxu0 0.0
    %111 = vmatpush1.msra.mxu0 0.0
    %112 = vmatprep.subr.mxu0 0.0
    %113 = vmatpush1.msra.mxu0 0.0
    %114 = vmatprep.subr.mxu0 0.0
    %115 = vmatpush1.msra.mxu0 0.0
    %116 = vmatprep.subr.mxu0 0.0
    %117 = vmatpush1.msra.mxu0 0.0
    %118 = vmatprep.subr.mxu0 0.0
    %119 = vmatpush1.msra.mxu0 0.0
    %120 = vmatprep.subr.mxu0 0.0
    %121 = vmatpush1.msra.mxu0 0.0
    %122 = vmatprep.subr.mxu0 0.0
    %123 = vmatpush1.msra.mxu0 0.0
    %124 = vmatprep.subr.mxu0 0.0
    %125 = vmatpush1.msra.mxu0 0.0
    %126 = vmatprep.subr.mxu0 0.0
    %127 = vmatpush1.msra.mxu0 0.0
    %128 = vmatprep.subr.mxu0 0.0
    %129 = vmatpush1.msra.mxu0 0.0
    %130 = vmatprep.subr.mxu0 0.0
    %131 = vmatpush1.msra.mxu0 0.0
    %132 = vmatprep.mubr.f32.mxu0 0.0
    %133 = vmatmul.mubr.f32.gmra.mrb[0].mxu0 %v63
    %v134 = vpop.f32.mrb[0].mxu0
    %v135 = vadd.f32 0.0, %v134
    %v136 = vpop.f32.mrb[0].mxu0
    %137 = vmatprep.mubr.f32.mxu0 0.0
    %138 = vmatmul.mubr.f32.gmra.mrb[0].mxu0 %v66
    %v139 = vpop.f32.mrb[0].mxu0
    %v140 = vadd.f32 0.0, %v139
    %v141 = vpop.f32.mrb[0].mxu0
    %142 = vdwg.mxu0
    %v143 = vmul.f32 %v135, 0.5
    %v144 = vmul.f32 %v140, 0.5
    %v145 = vmul.f32 %v135, %v135
    %v146 = vmul.f32 %v140, %v140
    %v147 = vmul.f32 %v145, %v135
    %v148 = vmul.f32 %v146, %v140
    %v149 = vmul.f32 %v147, 0.044715
    %v150 = vmul.f32 %v148, 0.044715
    %v151 = vadd.f32 %v135, %v149
    %v152 = vadd.f32 %v140, %v150
    %v153 = vmul.f32 %v151, 0.7978846
    %v154 = vmul.f32 %v152, 0.7978846
    %v155 = vtanh.pop %v153
    %v156 = vtanh.pop %v154
    %v157 = vadd.f32 %v155, 1.0
    %v158 = vadd.f32 %v156, 1.0
    %v159 = vmul.f32 %v143, %v157
    %v160 = vmul.f32 %v144, %v158
    %163 = vrot.lane.b32.xlu0 %v135, 64
    %v164 = vpop.permute.xlu0 %163
    %165 = vrot.lane.b32.xlu0 %v140, 64
    %v166 = vpop.permute.xlu0 %165
    %v169 = vmul.f32 %v159, %v164
    %v170 = vmul.f32 %v160, %v166
    %v171 = vld [vmem:[#allocation3] sm:$0xff]
    %v172 = vld [vmem:[#allocation3 + $0x8] sm:$0xff]
    %v173 = vld [vmem:[%s3] sm:$0xff]
    %v174 = vld [vmem:[%s3 + $0x8] sm:$0xff]
    %v175 = vld [vmem:[%s3 + $0x10] sm:$0xff]
    %v176 = vld [vmem:[%s3 + $0x18] sm:$0xff]
    %v177 = vld [vmem:[%s3 + $0x20] sm:$0xff]
    %v178 = vld [vmem:[%s3 + $0x28] sm:$0xff]
    %v179 = vld [vmem:[%s3 + $0x30] sm:$0xff]
    %v180 = vld [vmem:[%s3 + $0x38] sm:$0xff]
    %vm181 = vcmask 523264
    %v183 = vsel %vm181, %v169, 0
    %v186 = vsel %vm181, %v170, 0
    %188 = vmatprep.subr.mxu0 0.0
    %189 = vmatpush1.msra.mxu0 %v173
    %190 = vmatprep.subr.mxu0 0.0
    %191 = vmatpush1.msra.mxu0 %v174
    %192 = vmatprep.subr.mxu0 0.0
    %193 = vmatpush1.msra.mxu0 %v175
    %194 = vmatprep.subr.mxu0 0.0
    %195 = vmatpush1.msra.mxu0 %v176
    %196 = vmatprep.subr.mxu0 0.0
    %197 = vmatpush1.msra.mxu0 %v177
    %198 = vmatprep.subr.mxu0 0.0
    %199 = vmatpush1.msra.mxu0 %v178
    %200 = vmatprep.subr.mxu0 0.0
    %201 = vmatpush1.msra.mxu0 %v179
    %202 = vmatprep.subr.mxu0 0.0
    %203 = vmatpush1.msra.mxu0 %v180
    %204 = vmatprep.subr.mxu0 0.0
    %205 = vmatpush1.msra.mxu0 0.0
    %206 = vmatprep.subr.mxu0 0.0
    %207 = vmatpush1.msra.mxu0 0.0
    %208 = vmatprep.subr.mxu0 0.0
    %209 = vmatpush1.msra.mxu0 0.0
    %210 = vmatprep.subr.mxu0 0.0
    %211 = vmatpush1.msra.mxu0 0.0
    %212 = vmatprep.subr.mxu0 0.0
    %213 = vmatpush1.msra.mxu0 0.0
    %214 = vmatprep.subr.mxu0 0.0
    %215 = vmatpush1.msra.mxu0 0.0
    %216 = vmatprep.subr.mxu0 0.0
    %217 = vmatpush1.msra.mxu0 0.0
    %218 = vmatprep.subr.mxu0 0.0
    %219 = vmatpush1.msra.mxu0 0.0
    %220 = vmatprep.subr.mxu0 0.0
    %221 = vmatpush1.msra.mxu0 0.0
    %222 = vmatprep.subr.mxu0 0.0
    %223 = vmatpush1.msra.mxu0 0.0
    %224 = vmatprep.subr.mxu0 0.0
    %225 = vmatpush1.msra.mxu0 0.0
    %226 = vmatprep.subr.mxu0 0.0
    %227 = vmatpush1.msra.mxu0 0.0
    %228 = vmatprep.subr.mxu0 0.0
    %229 = vmatpush1.msra.mxu0 0.0
    %230 = vmatprep.subr.mxu0 0.0
    %231 = vmatpush1.msra.mxu0 0.0
    %232 = vmatprep.subr.mxu0 0.0
    %233 = vmatpush1.msra.mxu0 0.0
    %234 = vmatprep.subr.mxu0 0.0
    %235 = vmatpush1.msra.mxu0 0.0
    %236 = vmatprep.subr.mxu0 0.0
    %237 = vmatpush1.msra.mxu0 0.0
    %238 = vmatprep.subr.mxu0 0.0
    %239 = vmatpush1.msra.mxu0 0.0
    %240 = vmatprep.subr.mxu0 0.0
    %241 = vmatpush1.msra.mxu0 0.0
    %242 = vmatprep.subr.mxu0 0.0
    %243 = vmatpush1.msra.mxu0 0.0
    %244 = vmatprep.subr.mxu0 0.0
    %245 = vmatpush1.msra.mxu0 0.0
    %246 = vmatprep.subr.mxu0 0.0
    %247 = vmatpush1.msra.mxu0 0.0
    %248 = vmatprep.subr.mxu0 0.0
    %249 = vmatpush1.msra.mxu0 0.0
    %250 = vmatprep.subr.mxu0 0.0
    %251 = vmatpush1.msra.mxu0 0.0
    %252 = vmatprep.mubr.f32.mxu0 0.0
    %253 = vmatmul.mubr.f32.gmra.mrb[0].mxu0 %v183
    %v254 = vpop.f32.mrb[0].mxu0
    %v255 = vadd.f32 0.0, %v254
    %v256 = vpop.f32.mrb[0].mxu0
    %257 = vmatprep.mubr.f32.mxu0 0.0
    %258 = vmatmul.mubr.f32.gmra.mrb[0].mxu0 %v186
    %v259 = vpop.f32.mrb[0].mxu0
    %v260 = vadd.f32 0.0, %v259
    %v261 = vpop.f32.mrb[0].mxu0
    %262 = vdwg.mxu0
    %v263 = vadd.f32 %v171, %v255
    %v264 = vadd.f32 %v172, %v260
    %265 = vst.msk [vmem:[#allocation3] sm:$0xff] %vm61, %v263
    %266 = vst.msk [vmem:[#allocation3 + $0x8] sm:$0xff] %vm61, %v264
    // Predicated region
    $region22: #{tpu_custom_call.1} parent=1 // pred_check
      %p267 = pneg %p18
    $region23: #{tpu_custom_call.1} parent=1 // pred_check_branch
      %269 = sbr.rel (%p267) target = $region25
    $region24: #{tpu_custom_call.1} parent=1 // pred_region
      %v270 = vld [vmem:[%s0] sm:$0xff]
      %v271 = vld [vmem:[%s0 + $0x8] sm:$0xff]
      %v272 = vld [vmem:[#allocation3] sm:$0xff]
      %v273 = vld [vmem:[#allocation3 + $0x8] sm:$0xff]
      %v274 = vadd.f32 %v270, %v272
      %v275 = vadd.f32 %v271, %v273
      %276 = vst.msk [vmem:[#allocation4] sm:$0xff] %vm61, %v274
      %277 = vst.msk [vmem:[#allocation4 + $0x8] sm:$0xff] %vm61, %v275
    $region25: #{tpu_custom_call.1} parent=1 // pred_fallthru
      _
    // Predicated region
    $region26: #{tpu_custom_call.1} parent=1 // pred_check
      _
    $region27: #{tpu_custom_call.1} parent=1 // pred_check_branch
      %279 = sbr.rel (0) target = $region29
    $region28: #{tpu_custom_call.1} parent=1 // pred_region
      %s281 = ssub.s32 256, 256
      %282 = vsyncadd [#allocation5], %s281
      %s283 = sshll.u32 [#allocation4], 4
      %s284 = int_to_ptr.vmem [resolvable:$true] %s283
      %289 = dma.vmem_to_hbm [thread:$0]  %s284, 256, %s4, [#allocation5], 128, 128, 8
    $region29: #{tpu_custom_call.1} parent=1 // pred_fallthru
      _
    // Predicated region
    $region30: #{tpu_custom_call.1} parent=1 // pred_check
      _
    $region31: #{tpu_custom_call.1} parent=1 // pred_check_branch
      %291 = sbr.rel (0) target = $region33
    $region32: #{tpu_custom_call.1} parent=1 // pred_region
      %292 = dma.done [#allocation5], 256
    $region33: #{tpu_custom_call.1} parent=1 // pred_fallthru
      _
    %293 = vsyncpa [#allocation5], 1

</llo_original>
